<compile_context>
chip_gen: v6e
topology: v6e:2x2x1
jax: 0.10.0
libtpu: 0.0.40
codegen_flags: <defaults>
</compile_context>

<pallas_src>
import jax
import jax.numpy as jnp
from jax.experimental import pallas as pl
from jax.experimental.pallas import tpu as pltpu


def _prediction_kernel(locc_ref, cand_ref, out_ref):
    # locc_ref: (1, 1, S, E)      -- (c_n @ W_k.T) / E, in the math dtype
    # cand_ref: (1, 1, tm, S, E)  -- streamed candidate tile for (k, n, m-tile)
    # out_ref:  (1, 1, tm, S)     -- f32 output tile
    cand = cand_ref[0, 0]                                  # (tm, S, E)
    locc = locc_ref[0, 0]                                  # (S, E)
    # Multiply in the candidates' native dtype (bf16 stays bf16 on v6e/v7x);
    # accumulate the E-reduction in f32.
    prod = cand * locc[None, :, :]                         # (tm, S, E)
    out_ref[0, 0] = jnp.sum(prod, axis=-1, dtype=jnp.float32).astype(out_ref.dtype)


def _pick_m_tile(m, s, e, itemsize, target_bytes=8 * 1024 * 1024):
    """Returns (m_tile, m_padded).

    Picks the largest M-tile whose (tm, S, E) candidate slab is <= target_bytes
    (~8 MiB: big enough that the ~0.35us/grid-step overhead is ~10-15% even on
    v7x's 3.2 TB/s HBM, while 2x double-buffered tiles stay well under the
    scoped-VMEM budget).  If the tile is smaller than M it must be a multiple
    of 8 (output block's second-to-last dim), so awkward M values are padded
    rather than collapsing to a tiny/unaligned divisor.
    """
    row_bytes = s * e * itemsize
    max_tm = max(1, target_bytes // row_bytes)
    if m <= max_tm:
        return m, m                                  # single tile, full extent
    max_tm = max(8, (max_tm // 8) * 8)               # sublane-aligned tiling
    # Prefer an aligned divisor of M (no padding) as long as it is not tiny.
    for d in range(max_tm, 7, -8):
        if m % d == 0 and d * 4 >= max_tm:
            return d, m
    # Otherwise pad M up to a multiple of an aligned tile (pad < one tile).
    m_pad = ((m + max_tm - 1) // max_tm) * max_tm
    return max_tm, m_pad


def prediction_network_forward(c, weights, candidates, *, m_tile=None):
    """Pallas forward of PredictionNetwork (rnnMode=None, dropout=False).

    c:          (N, S, A)        autoregressive features
    weights:    (K, E, A)        stacked Linear(A -> E, bias=False) weights
    candidates: (K, N, M, S, E)  candidates[k]; may be bf16 to halve HBM traffic

    Returns stacked predictions (K, N, M, S) in float32; out[k] equals the k-th
    element of the list returned by the PyTorch forward.
    """
    K, E, A = weights.shape
    N, S, _ = c.shape
    Kc, Nc, M, Sc, Ec = candidates.shape
    assert (Kc, Nc, Sc, Ec) == (K, N, S, E)

    # Hoisted locC with 1/E folded in (tiny vs candidates). Removes the in-kernel
    # MXU step and any carried state -> all grid axes are independent/parallel.
    locc = jnp.einsum(
        "nsa,kea->knse",
        c.astype(jnp.float32), weights.astype(jnp.float32),
        preferred_element_type=jnp.float32) * (1.0 / E)
    # bf16 candidates -> bf16 multiply (v6e/v7x bf16 VALU); f32 otherwise.
    math_dtype = jnp.bfloat16 if candidates.dtype == jnp.bfloat16 else jnp.float32
    locc = locc.astype(math_dtype)

    if m_tile is None:
        m_tile, m_pad = _pick_m_tile(M, S, E, candidates.dtype.itemsize)
    else:
        assert m_tile == M or m_tile % 8 == 0, "tiled M must be 8-aligned"
        m_pad = ((M + m_tile - 1) // m_tile) * m_tile
    if m_pad != M:
        candidates = jnp.pad(
            candidates, ((0, 0), (0, 0), (0, m_pad - M), (0, 0), (0, 0)))
    m_tiles = m_pad // m_tile

    # Advisory cost: dominated by streaming the candidate tensor.
    flops = 2 * K * N * m_pad * S * E
    bytes_accessed = (K * N * m_pad * S * E * candidates.dtype.itemsize
                      + int(locc.size) * locc.dtype.itemsize
                      + K * N * m_pad * S * 4)

    # NOTE: output last dim is S; for production shapes prefer S a multiple of
    # 128 (lane-dense stores). E < 128 (e.g. the test's E=64) leaves candidate
    # vregs half-empty for the multiply/reduce — use 128-multiple E when possible.
    out = pl.pallas_call(
        _prediction_kernel,
        out_shape=jax.ShapeDtypeStruct((K, N, m_pad, S), jnp.float32),
        grid_spec=pltpu.PrefetchScalarGridSpec(
            num_scalar_prefetch=0,
            grid=(K, N, m_tiles),
            in_specs=[
                # locC slab for (k, n); block index is constant along mt so it
                # is not re-DMAed while the candidate tiles stream.
                pl.BlockSpec((1, 1, S, E), lambda k, n, mt: (k, n, 0, 0)),
                # streamed candidate tile (double-buffered by Pallas).
                pl.BlockSpec((1, 1, m_tile, S, E),
                             lambda k, n, mt: (k, n, mt, 0, 0)),
            ],
            out_specs=pl.BlockSpec((1, 1, m_tile, S),
                                   lambda k, n, mt: (k, n, mt, 0)),
        ),
        compiler_params=pltpu.CompilerParams(
            # No carried state anywhere -> every axis is parallel (v7x 2-TC
            # sharding can pick whichever axis balances best).
            dimension_semantics=("parallel", "parallel", "parallel"),
            # Cover 2x double-buffered ~8 MiB candidate tiles + small blocks,
            # still far below v7x's 64 MiB physical VMEM.
            vmem_limit_bytes=40 * 1024 * 1024,
        ),
        cost_estimate=pl.CostEstimate(
            flops=flops, transcendentals=0, bytes_accessed=bytes_accessed),
    )(locc, candidates)

    if m_pad != M:
        out = out[:, :, :M, :]
    return out


def _reference_forward(c, weights, candidates):
    outs = []
    for k in range(weights.shape[0]):
        locC = jnp.einsum("nsa,ea->nse", c, weights[k])          # (N, S, E)
        outs.append(jnp.mean(locC[:, None, :, :] * candidates[k], axis=-1))
    return jnp.stack(outs, axis=0)                               # (K, N, M, S)


if __name__ == "__main__":
    # Small shapes consistent with the module's forward.
    nPredicts = 2
    N, S = 2, 8             # batch, sequence
    dimOutputAR = 32        # A
    dimOutputEncoder = 64   # E  (> A -> the "residual" init branch applies)
    negM = 4                # candidates per (n, s)

    key = jax.random.PRNGKey(0)
    k_c, k_w, k_cand = jax.random.split(key, 3)

    # Deterministic parameter init mimicking the PyTorch __init__:
    # W = concat([randn(A, A), 0.01 * randn(E - A, A)], dim=0) -> (E, A)
    RESIDUAL_STD = 0.01
    residual = dimOutputEncoder - dimOutputAR
    w_keys = jax.random.split(k_w, nPredicts)
    weights = []
    for i in range(nPredicts):
        ka, kb = jax.random.split(w_keys[i])
        w_main = jax.random.normal(ka, (dimOutputAR, dimOutputAR), jnp.float32)
        w_res = RESIDUAL_STD * jax.random.normal(
            kb, (residual, dimOutputAR), jnp.float32)
        weights.append(jnp.concatenate([w_main, w_res], axis=0))   # (E, A)
    weights = jnp.stack(weights, axis=0)                           # (K, E, A)

    c = jax.random.normal(k_c, (N, S, dimOutputAR), jnp.float32)
    candidates = jax.random.normal(
        k_cand, (nPredicts, N, negM, S, dimOutputEncoder), jnp.float32)

    out = prediction_network_forward(c, weights, candidates)
    out = jax.block_until_ready(out)

    ref = _reference_forward(c, weights, candidates)
    assert out.shape == (nPredicts, N, negM, S)
    # f32 candidate path matches the f32 reference tightly; relax for bf16 inputs.
    assert jnp.allclose(out, ref, atol=1e-4, rtol=1e-4)

    print("KERNEL_OK")
</pallas_src>

<mosaic_0001>
module attributes {stable_mosaic.version = 11 : i64} {
  func.func @_prediction_kernel(%arg0: i32, %arg1: i32, %arg2: i32, %arg3: memref<1x1x8x64xf32, #tpu.memory_space<vmem>>, %arg4: memref<1x1x4x8x64xf32, #tpu.memory_space<vmem>>, %arg5: memref<1x1x4x8xf32, #tpu.memory_space<vmem>>) attributes {dimension_semantics = [#tpu.dimension_semantics<parallel>, #tpu.dimension_semantics<parallel>, #tpu.dimension_semantics<parallel>], iteration_bounds = array<i64: 2, 2, 1>, scalar_prefetch = 0 : i64, scratch_operands = 0 : i64, tpu.core_type = #tpu.core_type<tc>, window_params = [{transform_indices = @transform_0, window_bounds = array<i64: 1, 1, 8, 64>}, {transform_indices = @transform_1, window_bounds = array<i64: 1, 1, 4, 8, 64>}, {transform_indices = @transform_2, window_bounds = array<i64: 1, 1, 4, 8>}]} {
    %c0 = arith.constant 0 : index
    %c0_0 = arith.constant 0 : index
    %c0_1 = arith.constant 0 : index
    %c0_2 = arith.constant 0 : index
    %c0_3 = arith.constant 0 : index
    %0 = vector.load %arg4[%c0, %c0_0, %c0_1, %c0_2, %c0_3] : memref<1x1x4x8x64xf32, #tpu.memory_space<vmem>>, vector<1x1x4x8x64xf32>
    %1 = vector.shape_cast %0 : vector<1x1x4x8x64xf32> to vector<4x8x64xf32>
    %c0_4 = arith.constant 0 : index
    %c0_5 = arith.constant 0 : index
    %c0_6 = arith.constant 0 : index
    %c0_7 = arith.constant 0 : index
    %2 = vector.load %arg3[%c0_4, %c0_5, %c0_6, %c0_7] : memref<1x1x8x64xf32, #tpu.memory_space<vmem>>, vector<1x1x8x64xf32>
    %3 = vector.shape_cast %2 : vector<1x1x8x64xf32> to vector<8x64xf32>
    %4 = vector.shape_cast %3 : vector<8x64xf32> to vector<1x8x64xf32>
    %5 = vector.broadcast %4 : vector<1x8x64xf32> to vector<4x8x64xf32>
    %6 = arith.mulf %1, %5 : vector<4x8x64xf32>
    %cst = arith.constant dense<0.000000e+00> : vector<4x8xf32>
    %7 = vector.multi_reduction <add>, %6, %cst [2] : vector<4x8x64xf32> to vector<4x8xf32>
    %c0_8 = arith.constant 0 : index
    %c0_9 = arith.constant 0 : index
    %c0_10 = arith.constant 0 : index
    %c0_11 = arith.constant 0 : index
    %8 = vector.load %arg5[%c0_8, %c0_9, %c0_10, %c0_11] : memref<1x1x4x8xf32, #tpu.memory_space<vmem>>, vector<1x1x4x8xf32>
    %9 = vector.shape_cast %8 : vector<1x1x4x8xf32> to vector<4x8xf32>
    %10 = vector.shape_cast %7 : vector<4x8xf32> to vector<1x1x4x8xf32>
    tpu.vector_store %arg5[%c0_8, %c0_9, %c0_10, %c0_11], %10 {strides = array<i32>} : memref<1x1x4x8xf32, #tpu.memory_space<vmem>>, vector<1x1x4x8xf32>,
    return
  }
  func.func @transform_0(%arg0: i32, %arg1: i32, %arg2: i32) -> (i32, i32, i32, i32) {
    %c0_i32 = arith.constant 0 : i32
    %c0_i32_0 = arith.constant 0 : i32
    %c0_i32_1 = arith.constant 0 : i32
    return %arg0, %arg1, %c0_i32, %c0_i32_0 : i32, i32, i32, i32
  }
  func.func @transform_1(%arg0: i32, %arg1: i32, %arg2: i32) -> (i32, i32, i32, i32, i32) {
    %c0_i32 = arith.constant 0 : i32
    %c0_i32_0 = arith.constant 0 : i32
    %c0_i32_1 = arith.constant 0 : i32
    return %arg0, %arg1, %arg2, %c0_i32, %c0_i32_0 : i32, i32, i32, i32, i32
  }
  func.func @transform_2(%arg0: i32, %arg1: i32, %arg2: i32) -> (i32, i32, i32, i32) {
    %c0_i32 = arith.constant 0 : i32
    %c0_i32_0 = arith.constant 0 : i32
    return %arg0, %arg1, %arg2, %c0_i32 : i32, i32, i32, i32
  }
}

</mosaic_0001>

<llo_original>
// kernel: tpu_custom_call.1
$region0: #{tpu_custom_call.1}
  #allocation0 [shape = 'u32[]', space=smem, size = 0x4, offset = 0x4, fixed_abs, tag = 'smem constant byte address 0x4 - core index']
  #allocation1 [shape = 'u32[144,128]{1,0:T(1,128)}', space=vmem, size = 0x12000, scoped, tag = 'internal scratch']
  %s0 = inlined_call_operand.hbm [shape: f32[2,2,8,64], index: 0, kind: input, shape index: {}]
  %s1 = inlined_call_operand.hbm [shape: f32[2,2,4,8,64], index: 1, kind: input, shape index: {}]
  %s2 = inlined_call_operand.hbm [shape: f32[2,2,4,8], index: 2, kind: output, shape index: {}]
  %s3 = sld [smem:[#allocation0]]
  $region49: #{tpu_custom_call.1} parent=0
    _
  %s5 = ssub.s32 1, %s3
  %s6 = scalar_select 0, %s5, %s3
  $region1: #{tpu_custom_call.1} parent=0
    #allocation2 [shape = 'u8[8192]{0}', space=vmem, size = 0x2000, scoped, tag = 'input window, operand 0']
    #allocation3 [shape = 's32[2]{0}', space=sflag, size = 0x8, scoped, tag = 'scoped memory for tpu_custom_call.1']
    #allocation4 [shape = 's32[2]{0}', space=sflag, size = 0x8, scoped, tag = 'scoped memory for tpu_custom_call.1']
    #allocation5 [shape = 'u8[32768]{0}', space=vmem, size = 0x8000, scoped, tag = 'input window, operand 1']
    #allocation6 [shape = 's32[2]{0}', space=sflag, size = 0x8, scoped, tag = 'scoped memory for tpu_custom_call.1']
    #allocation7 [shape = 'u8[4096]{0}', space=vmem, size = 0x1000, scoped, tag = 'output window, operand 0']
    %7 = vsyncpa [#allocation3], 0
    %s8 = scalar_lea.sflag [#allocation3], 1
    %9 = vsyncpa %s8, 0
    %10 = vsyncpa [#allocation6], 0
    %s11 = scalar_lea.sflag [#allocation6], 1
    %12 = vsyncpa %s11, 0
    %13 = vsyncpa [#allocation4], 0
    %s14 = scalar_lea.sflag [#allocation4], 1
    %15 = vsyncpa %s14, 0
    loop: start=0, step=1, limit=6
    $region2: #{tpu_custom_call.1} parent=1 // loop_pre_header
      _
    $region3: #{tpu_custom_call.1} parent=1 // loop_header
      %s17 = sphi 0, %s21
      %p18 = scmp.ge.s32.totalorder %s17, 6
      %s24 = sphi 0, %s43
      %s25 = sphi 0, %s39
      %s26 = sphi 0, %s35
      %s27 = sphi 0, %s24
      %s28 = sphi 0, %s25
      %s29 = sphi 0, %s26
      %s30 = sphi 0, %s27
      %s31 = sphi 0, %s28
      %s32 = sphi 0, %s29
      %s48 = sphi 0, %s50
      %s51 = sphi 0, %s48
      %s52 = sphi 0, %s51
      %s68 = sphi 0, %s52
      %s78 = sphi 0, %s80
      %s81 = sphi 0, %s78
      %s82 = sphi 0, %s81
      %s98 = sphi 0, %s82
      %s108 = sphi 0, %s110
      %s111 = sphi 0, %s108
      %s112 = sphi 0, %s111
      %s128 = sphi 0, %s112
    $region4: #{tpu_custom_call.1} parent=1 // loop_header_branch
      %20 = sbr.rel (%p18) target = $region8
    $region5: #{tpu_custom_call.1} parent=1 // loop_body
      %s22 = ssub.s32 %s17, 1
      %s23 = ssub.s32 %s17, 2
      %s33 = sadd.s32 1, %s26
      %p34 = scmp.ge.s32.totalorder %s33, 1
      %s35 = scalar_select %p34, 0, %s33
      %s36 = sadd.s32 1, %s25
      %s37 = scalar_select %p34, %s36, %s25
      %p38 = scmp.ge.s32.totalorder %s37, 2
      %s39 = scalar_select %p38, 0, %s37
      %s40 = sadd.s32 1, %s24
      %s41 = scalar_select %p38, %s40, %s24
      %p42 = scmp.ge.s32.totalorder %s41, 2
      %s43 = scalar_select %p42, 0, %s41
      %s44 = ssub.s32 %s24, %s43
      %s45 = ssub.s32 %s25, %s39
      %s46 = sor.u32 %s44, %s45
      %p47 = scmp.eq.s32.totalorder %s46, 0
      %s49 = sadd.s32 %s48, 1
      %s50 = scalar_select %p47, %s48, %s49
      %p53 = pneg %p47
      %p54 = scmp.eq.s32.totalorder %s17, 3
      %p55 = por %p53, %p54
      %p56 = scmp.ne.s32.totalorder %s48, %s51
      %p57 = scmp.eq.s32.totalorder %s17, 0
      %p58 = por %p56, %p57
      %p59 = scmp.ne.s32.totalorder %s48, %s51
      %p60 = scmp.eq.s32.totalorder %s22, 3
      %p61 = por %p59, %p60
      %p62 = scmp.ne.s32.totalorder %s51, %s52
      %p63 = scmp.eq.s32.totalorder %s22, 0
      %p64 = por %p62, %p63
      %p65 = scmp.ne.s32.totalorder %s51, %s52
      %p66 = scmp.eq.s32.totalorder %s23, 3
      %p67 = por %p65, %p66
      %p69 = scmp.ne.s32.totalorder %s52, %s68
      %p70 = scmp.eq.s32.totalorder %s23, 0
      %p71 = por %p69, %p70
      %s72 = ssub.s32 %s24, %s43
      %s73 = ssub.s32 %s25, %s39
      %s74 = sor.u32 %s72, %s73
      %s75 = ssub.s32 %s26, %s35
      %s76 = sor.u32 %s74, %s75
      %p77 = scmp.eq.s32.totalorder %s76, 0
      %s79 = sadd.s32 %s78, 1
      %s80 = scalar_select %p77, %s78, %s79
      %p83 = pneg %p77
      %p84 = scmp.eq.s32.totalorder %s17, 3
      %p85 = por %p83, %p84
      %p86 = scmp.ne.s32.totalorder %s78, %s81
      %p87 = scmp.eq.s32.totalorder %s17, 0
      %p88 = por %p86, %p87
      %p89 = scmp.ne.s32.totalorder %s78, %s81
      %p90 = scmp.eq.s32.totalorder %s22, 3
      %p91 = por %p89, %p90
      %p92 = scmp.ne.s32.totalorder %s81, %s82
      %p93 = scmp.eq.s32.totalorder %s22, 0
      %p94 = por %p92, %p93
      %p95 = scmp.ne.s32.totalorder %s81, %s82
      %p96 = scmp.eq.s32.totalorder %s23, 3
      %p97 = por %p95, %p96
      %p99 = scmp.ne.s32.totalorder %s82, %s98
      %p100 = scmp.eq.s32.totalorder %s23, 0
      %p101 = por %p99, %p100
      %s102 = ssub.s32 %s24, %s43
      %s103 = ssub.s32 %s25, %s39
      %s104 = sor.u32 %s102, %s103
      %s105 = ssub.s32 %s26, %s35
      %s106 = sor.u32 %s104, %s105
      %p107 = scmp.eq.s32.totalorder %s106, 0
      %s109 = sadd.s32 %s108, 1
      %s110 = scalar_select %p107, %s108, %s109
      %p113 = pneg %p107
      %p114 = scmp.eq.s32.totalorder %s17, 3
      %p115 = por %p113, %p114
      %p116 = scmp.ne.s32.totalorder %s108, %s111
      %p117 = scmp.eq.s32.totalorder %s17, 0
      %p118 = por %p116, %p117
      %p119 = scmp.ne.s32.totalorder %s108, %s111
      %p120 = scmp.eq.s32.totalorder %s22, 3
      %p121 = por %p119, %p120
      %p122 = scmp.ne.s32.totalorder %s111, %s112
      %p123 = scmp.eq.s32.totalorder %s22, 0
      %p124 = por %p122, %p123
      %p125 = scmp.ne.s32.totalorder %s111, %s112
      %p126 = scmp.eq.s32.totalorder %s23, 3
      %p127 = por %p125, %p126
      %p129 = scmp.ne.s32.totalorder %s112, %s128
      %p130 = scmp.eq.s32.totalorder %s23, 0
      %p131 = por %p129, %p130
      %p132 = scmp.le.s32.totalorder 1, %s17
      %p133 = scmp.lt.s32.totalorder %s17, 5
      %p134 = pnand %p132, %p133
      %p135 = pneg %p134
      // Predicated region
      $region9: #{tpu_custom_call.1} parent=5 // pred_check
        _
      $region10: #{tpu_custom_call.1} parent=5 // pred_check_branch
        %137 = sbr.rel (%p134) target = $region12
      $region11: #{tpu_custom_call.1} parent=5 // pred_region
        %s138 = ssub.s32 %s17, 1
      $region12: #{tpu_custom_call.1} parent=5 // pred_fallthru
        _
      %p139 = scmp.lt.s32.totalorder %s17, 4
      // Predicated region
      $region13: #{tpu_custom_call.1} parent=5 // pred_check
        %p140 = pneg %p139
      $region14: #{tpu_custom_call.1} parent=5 // pred_check_branch
        %142 = sbr.rel (%p140) target = $region16
      $region15: #{tpu_custom_call.1} parent=5 // pred_region
        // Predicated region
        $region17: #{tpu_custom_call.1} parent=15 // pred_check
          %p143 = pneg %p58
        $region18: #{tpu_custom_call.1} parent=15 // pred_check_branch
          %145 = sbr.rel (%p143) target = $region20
        $region19: #{tpu_custom_call.1} parent=15 // pred_region
          %s146 = sand.u32 %s48, 1
          %s147 = scalar_lea.sflag [#allocation3], %s146
          %s148 = sand.u32 %s48, 1
          %s149 = smul.addr %s148, 8
          %s150 = scalar_lea.vmem [#allocation2], %s149
          %s152 = ssub.s32 128, 128
          %153 = vsyncadd %s147, %s152
          %s154 = smul.addr %s24, 2
          %s155 = sadd.s32 %s25, %s154
          %s156 = smul.addr %s155, 128
          %s157 = scalar_lea.hbm %s0, %s156
          %s159 = sshll.u32 %s150, 4
          %s160 = int_to_ptr.vmem [resolvable:$true] %s159
          %162 = dma.hbm_to_vmem [thread:$0]  %s157, 128, %s160, %s147
        $region20: #{tpu_custom_call.1} parent=15 // pred_fallthru
          _
        // Predicated region
        $region21: #{tpu_custom_call.1} parent=15 // pred_check
          %p163 = pneg %p88
        $region22: #{tpu_custom_call.1} parent=15 // pred_check_branch
          %165 = sbr.rel (%p163) target = $region24
        $region23: #{tpu_custom_call.1} parent=15 // pred_region
          %s166 = sand.u32 %s78, 1
          %s167 = scalar_lea.sflag [#allocation6], %s166
          %s168 = sand.u32 %s78, 1
          %s169 = smul.addr %s168, 32
          %s170 = scalar_lea.vmem [#allocation5], %s169
          %s171 = smul.u32 4, %s26
          %s173 = ssub.s32 512, 512
          %174 = vsyncadd %s167, %s173
          %s175 = smul.addr %s25, 4
          %s176 = sadd.s32 %s171, %s175
          %s177 = smul.addr %s24, 8
          %s178 = sadd.s32 %s176, %s177
          %s179 = smul.addr %s178, 128
          %s180 = scalar_lea.hbm %s1, %s179
          %s181 = sshll.u32 %s170, 4
          %s182 = int_to_ptr.vmem [resolvable:$true] %s181
          %187 = dma.hbm_to_vmem [thread:$0]  %s180, 512, %s182, %s167, 128, 128, 8
        $region24: #{tpu_custom_call.1} parent=15 // pred_fallthru
          _
      $region16: #{tpu_custom_call.1} parent=5 // pred_fallthru
        _
      %p188 = scmp.le.s32.totalorder 1, %s17
      %p189 = scmp.lt.s32.totalorder %s17, 5
      %p190 = pnand %p188, %p189
      %p191 = pneg %p190
      // Predicated region
      $region25: #{tpu_custom_call.1} parent=5 // pred_check
        _
      $region26: #{tpu_custom_call.1} parent=5 // pred_check_branch
        %193 = sbr.rel (%p190) target = $region28
      $region27: #{tpu_custom_call.1} parent=5 // pred_region
        %s194 = ssub.s32 %s17, 1
        %s195 = sand.u32 %s51, 1
        %s196 = scalar_lea.sflag [#allocation3], %s195
        %s197 = sand.u32 %s51, 1
        %s198 = smul.addr %s197, 8
        %s199 = scalar_lea.vmem [#allocation2], %s198
        // Predicated region
        $region29: #{tpu_custom_call.1} parent=27 // pred_check
          %p200 = pneg %p64
        $region30: #{tpu_custom_call.1} parent=27 // pred_check_branch
          %202 = sbr.rel (%p200) target = $region32
        $region31: #{tpu_custom_call.1} parent=27 // pred_region
          %203 = dma.done %s196, 128
        $region32: #{tpu_custom_call.1} parent=27 // pred_fallthru
          _
        %s204 = sand.u32 %s81, 1
        %s205 = scalar_lea.sflag [#allocation6], %s204
        %s206 = sand.u32 %s81, 1
        %s207 = smul.addr %s206, 32
        %s208 = scalar_lea.vmem [#allocation5], %s207
        // Predicated region
        $region33: #{tpu_custom_call.1} parent=27 // pred_check
          %p209 = pneg %p94
        $region34: #{tpu_custom_call.1} parent=27 // pred_check_branch
          %211 = sbr.rel (%p209) target = $region36
        $region35: #{tpu_custom_call.1} parent=27 // pred_region
          %212 = dma.done %s205, 512
        $region36: #{tpu_custom_call.1} parent=27 // pred_fallthru
          _
        %s213 = sand.u32 %s51, 1
        %s214 = scalar_lea.sflag [#allocation3], %s213
        %s215 = sand.u32 %s51, 1
        %s216 = smul.addr %s215, 8
        %s217 = scalar_lea.vmem [#allocation2], %s216
        %p218 = pneg %p64
        %p219 = pneg %p61
        %s220 = sand.u32 %s81, 1
        %s221 = scalar_lea.sflag [#allocation6], %s220
        %s222 = sand.u32 %s81, 1
        %s223 = smul.addr %s222, 32
        %s224 = scalar_lea.vmem [#allocation5], %s223
        %p225 = pneg %p94
        %p226 = pneg %p91
        %p227 = pneg %p124
        %p228 = pneg %p121
        %s229 = sand.u32 %s111, 1
        %s230 = scalar_lea.sflag [#allocation4], %s229
        %s231 = sand.u32 %s111, 1
        %s232 = smul.addr %s231, 4
        %s233 = scalar_lea.vmem [#allocation7], %s232
        %s234 = smul.u32 4, %s29
        %v235 = vld [vmem:[%s208] sm:$0xff]
        %v236 = vld [vmem:[%s208 + $0x8] sm:$0xff]
        %v237 = vld [vmem:[%s208 + $0x10] sm:$0xff]
        %v238 = vld [vmem:[%s208 + $0x18] sm:$0xff]
        %v239 = vld [vmem:[%s199] sm:$0xff]
        %v240 = vmul.f32 %v235, %v239
        %v241 = vmul.f32 %v236, %v239
        %v242 = vmul.f32 %v237, %v239
        %v243 = vmul.f32 %v238, %v239
        %vm244 = vcmask 523264
        %v245 = vsel %vm244, %v240, 0.0
        %246 = vadd.xlane.f32.xlu0 %v245
        %v247 = vpop.xlane.xlu0 %246
        %v248 = vsel %vm244, %v241, 0.0
        %249 = vadd.xlane.f32.xlu0 %v248
        %v250 = vpop.xlane.xlu0 %249
        %v251 = vsel %vm244, %v242, 0.0
        %252 = vadd.xlane.f32.xlu0 %v251
        %v253 = vpop.xlane.xlu0 %252
        %v254 = vsel %vm244, %v243, 0.0
        %255 = vadd.xlane.f32.xlu0 %v254
        %v256 = vpop.xlane.xlu0 %255
        %v261 = vlaneseq
        %v262 = vand.u32 %v261, 127
        %v263 = vlaneseq
        %v264 = vshrl.u32 %v263, 7
        %v265 = vsub.s32 %v262, %v264
        %v266 = vrot.slane %v247, %v265
        %v267 = vlaneseq
        %v268 = vshrl.u32 %v267, 7
        %v269 = vsub.s32 %v262, %v268
        %v270 = vrot.slane %v250, %v269
        %v271 = vlaneseq
        %v272 = vshrl.u32 %v271, 7
        %v273 = vsub.s32 %v262, %v272
        %v274 = vrot.slane %v253, %v273
        %v275 = vlaneseq
        %v276 = vshrl.u32 %v275, 7
        %v277 = vsub.s32 %v262, %v276
        %v278 = vrot.slane %v256, %v277
        %vm279 = vcmask 1041409
        %v280 = vsel %vm279, %v270, %v266
        %vm281 = vcmask 1042434
        %v282 = vsel %vm281, %v274, %v280
        %vm283 = vcmask 1043459
        %v284 = vsel %vm283, %v278, %v282
        %vm286 = vcmask 60416
        %287 = vst.msk [vmem:[%s233] sm:$0xf] %vm286, %v284
        %s288 = sand.u32 %s111, 1
        %s289 = scalar_lea.sflag [#allocation4], %s288
        %s290 = sand.u32 %s111, 1
        %s291 = smul.addr %s290, 4
        %s292 = scalar_lea.vmem [#allocation7], %s291
        // Predicated region
        $region37: #{tpu_custom_call.1} parent=27 // pred_check
          %p293 = pneg %p121
        $region38: #{tpu_custom_call.1} parent=27 // pred_check_branch
          %295 = sbr.rel (%p293) target = $region40
        $region39: #{tpu_custom_call.1} parent=27 // pred_region
          %s297 = ssub.s32 64, 64
          %298 = vsyncadd %s289, %s297
          %s299 = sadd.s32 %s29, %s28
          %s300 = smul.addr %s27, 2
          %s301 = sadd.s32 %s299, %s300
          %s302 = smul.addr %s301, 64
          %s303 = scalar_lea.hbm %s2, %s302
          %s305 = sshll.u32 %s292, 4
          %s306 = int_to_ptr.vmem [resolvable:$true] %s305
          %308 = dma.vmem_to_hbm [thread:$0]  %s306, 64, %s303, %s289
        $region40: #{tpu_custom_call.1} parent=27 // pred_fallthru
          _
      $region28: #{tpu_custom_call.1} parent=5 // pred_fallthru
        _
      %p309 = scmp.le.s32.totalorder 2, %s17
      // Predicated region
      $region41: #{tpu_custom_call.1} parent=5 // pred_check
        %p310 = pneg %p309
      $region42: #{tpu_custom_call.1} parent=5 // pred_check_branch
        %312 = sbr.rel (%p310) target = $region44
      $region43: #{tpu_custom_call.1} parent=5 // pred_region
        %s313 = ssub.s32 %s17, 2
        // Predicated region
        $region45: #{tpu_custom_call.1} parent=43 // pred_check
          %p314 = pneg %p127
        $region46: #{tpu_custom_call.1} parent=43 // pred_check_branch
          %316 = sbr.rel (%p314) target = $region48
        $region47: #{tpu_custom_call.1} parent=43 // pred_region
          %s317 = sand.u32 %s112, 1
          %s318 = scalar_lea.sflag [#allocation4], %s317
          %s319 = sand.u32 %s112, 1
          %s320 = smul.addr %s319, 4
          %s321 = scalar_lea.vmem [#allocation7], %s320
          %322 = dma.done %s318, 64
        $region48: #{tpu_custom_call.1} parent=43 // pred_fallthru
          _
      $region44: #{tpu_custom_call.1} parent=5 // pred_fallthru
        _
    $region6: #{tpu_custom_call.1} parent=1 // loop_footer
      %s21 = sadd.s32 1, %s17
    $region7: #{tpu_custom_call.1} parent=1 // loop_footer_branch
      %16 = sbr.rel target = $region3
    $region8: #{tpu_custom_call.1} parent=1 // loop_exit
      _
    %323 = vsyncpa [#allocation3], 1
    %s324 = scalar_lea.sflag [#allocation3], 1
    %325 = vsyncpa %s324, 1
    %326 = vsyncpa [#allocation6], 1
    %s327 = scalar_lea.sflag [#allocation6], 1
    %328 = vsyncpa %s327, 1
    %329 = vsyncpa [#allocation4], 1
    %s330 = scalar_lea.sflag [#allocation4], 1
    %331 = vsyncpa %s330, 1

</llo_original>
